<compile_context>
chip_gen: v7x
topology: tpu7x:2x2x1
jax: 0.10.0
libtpu: 0.0.40
codegen_flags: <defaults>
</compile_context>

<pallas_src>
import functools

import jax
import jax.numpy as jnp
from jax.experimental import pallas as pl
from jax.experimental.pallas import tpu as pltpu

EPS = 1e-5
_VMEM_LIMIT = 32 * 1024 * 1024          # safe scoped limit on v5e/v6e/v7x
_FUSED_VMEM_BUDGET = 20 * 1024 * 1024   # use the fused path only when it clearly fits


# ----------------------- fused single-call path (small inputs) -----------------------
def _fused_bn_relu_kernel(x_ref, gamma_ref, beta_ref, o_ref, *, eps):
    # x_ref: (N, C, M) whole array resident in VMEM.
    x = x_ref[...].astype(jnp.float32)
    n, _, m = x.shape
    cnt = jnp.float32(n * m)
    # Lane (last-axis) reduce first, then the cheap leading-axis reduce.
    s = jnp.sum(jnp.sum(x, axis=2, keepdims=True), axis=0, keepdims=True)        # (1,C,1)
    q = jnp.sum(jnp.sum(x * x, axis=2, keepdims=True), axis=0, keepdims=True)    # (1,C,1)
    mean = s / cnt
    var = q / cnt - mean * mean                           # biased variance (PyTorch BN fwd)
    inv = jax.lax.rsqrt(var + eps)
    scale = gamma_ref[...] * inv                          # (1,C,1), broadcast over N and M
    shift = beta_ref[...] - mean * scale
    o_ref[...] = jnp.maximum(x * scale + shift, 0.0).astype(o_ref.dtype)


# ----------------------- tiled two-pass fallback (large inputs) -----------------------
def _stats_kernel(x_ref, sum_ref, sq_ref):
    # x_ref: (R, TM) tile; sum_ref / sq_ref: (R, 1) accumulators resident across
    # the reduction grid axis (same output block index every step).
    j = pl.program_id(0)

    @pl.when(j == 0)
    def _init():
        sum_ref[...] = jnp.zeros_like(sum_ref)
        sq_ref[...] = jnp.zeros_like(sq_ref)

    x = x_ref[...].astype(jnp.float32)
    sum_ref[...] += jnp.sum(x, axis=1, keepdims=True)
    sq_ref[...] += jnp.sum(x * x, axis=1, keepdims=True)


def _norm_relu_kernel(x_ref, scale_ref, shift_ref, o_ref):
    x = x_ref[...].astype(jnp.float32)
    y = x * scale_ref[...] + shift_ref[...]
    o_ref[...] = jnp.maximum(y, 0.0).astype(o_ref.dtype)


def _pick_lane_tile(m):
    # Largest multiple of 128 that divides M (capped at 2048); otherwise full M.
    if m % 128 == 0:
        return next(t for t in (2048, 1024, 512, 256, 128) if m % t == 0)
    return m


def _batchnorm2d_relu_two_pass(x_nchw, gamma, beta, eps):
    N, C, H, W = x_nchw.shape
    M = H * W
    R = N * C
    x2 = x_nchw.reshape(R, M)  # contiguous reshape: zero-cost

    TM = _pick_lane_tile(M)
    grid_m = M // TM

    row_sum, row_sq = pl.pallas_call(
        _stats_kernel,
        out_shape=(jax.ShapeDtypeStruct((R, 1), jnp.float32),
                   jax.ShapeDtypeStruct((R, 1), jnp.float32)),
        grid=(grid_m,),
        in_specs=[pl.BlockSpec((R, TM), lambda j: (0, j))],
        out_specs=(pl.BlockSpec((R, 1), lambda j: (0, 0)),
                   pl.BlockSpec((R, 1), lambda j: (0, 0))),
        compiler_params=pltpu.CompilerParams(
            dimension_semantics=("arbitrary",),
            vmem_limit_bytes=_VMEM_LIMIT),
    )(x2)

    # tiny (N*C,) -> (C,) combine + per-row scale/shift precompute
    cnt = jnp.float32(N * M)
    ch_sum = jnp.sum(row_sum.reshape(N, C), axis=0)
    ch_sq = jnp.sum(row_sq.reshape(N, C), axis=0)
    mean = ch_sum / cnt
    var = ch_sq / cnt - mean * mean
    inv = jax.lax.rsqrt(var + eps)
    scale_c = gamma.astype(jnp.float32) * inv
    shift_c = beta.astype(jnp.float32) - mean * scale_c
    scale_r = jnp.tile(scale_c, N).reshape(R, 1)
    shift_r = jnp.tile(shift_c, N).reshape(R, 1)

    out2 = pl.pallas_call(
        _norm_relu_kernel,
        out_shape=jax.ShapeDtypeStruct((R, M), x2.dtype),
        grid=(grid_m,),
        in_specs=[pl.BlockSpec((R, TM), lambda j: (0, j)),
                  pl.BlockSpec((R, 1), lambda j: (0, 0)),
                  pl.BlockSpec((R, 1), lambda j: (0, 0))],
        out_specs=pl.BlockSpec((R, TM), lambda j: (0, j)),
        compiler_params=pltpu.CompilerParams(
            dimension_semantics=("parallel",),
            vmem_limit_bytes=_VMEM_LIMIT),
    )(x2, scale_r, shift_r)

    return out2.reshape(N, C, H, W)


# --------------------------------- public wrapper ---------------------------------
def batchnorm2d_relu(x_nchw, gamma, beta, *, eps=EPS):
    N, C, H, W = x_nchw.shape
    M = H * W
    numel = N * C * M
    # in + out (native dtype) + ~2 f32 temporaries
    fused_bytes = numel * (2 * x_nchw.dtype.itemsize + 8)

    if fused_bytes <= _FUSED_VMEM_BUDGET:
        x3 = x_nchw.reshape(N, C, M)                       # contiguous, zero-cost
        g3 = gamma.astype(jnp.float32).reshape(1, C, 1)
        b3 = beta.astype(jnp.float32).reshape(1, C, 1)
        out3 = pl.pallas_call(
            functools.partial(_fused_bn_relu_kernel, eps=eps),
            out_shape=jax.ShapeDtypeStruct((N, C, M), x_nchw.dtype),
            compiler_params=pltpu.CompilerParams(vmem_limit_bytes=_VMEM_LIMIT),
        )(x3, g3, b3)
        return out3.reshape(N, C, H, W)

    return _batchnorm2d_relu_two_pass(x_nchw, gamma, beta, eps)


if __name__ == "__main__":
    key = jax.random.PRNGKey(0)
    # BatchNorm2d(num_features=3) => C must be 3
    x = jax.random.normal(key, (2, 3, 16, 16), dtype=jnp.float32)

    # Deterministic BatchNorm2d default init: weight (gamma) = 1, bias (beta) = 0
    gamma = jnp.ones((3,), dtype=jnp.float32)
    beta = jnp.zeros((3,), dtype=jnp.float32)

    out = batchnorm2d_relu(x, gamma, beta)
    out = jax.block_until_ready(out)

    # Pure-JAX reference check (batch-stats BN + ReLU)
    mean = jnp.mean(x, axis=(0, 2, 3), keepdims=True)
    var = jnp.var(x, axis=(0, 2, 3), keepdims=True)
    ref = jnp.maximum((x - mean) * jax.lax.rsqrt(var + EPS), 0.0)
    assert jnp.allclose(out, ref, atol=2e-5, rtol=2e-5), "mismatch vs reference"

    print("KERNEL_OK")
</pallas_src>

<mosaic_0001>
module attributes {stable_mosaic.version = 11 : i64} {
  func.func @_fused_bn_relu_kernel(%arg0: memref<2x3x256xf32, #tpu.memory_space<vmem>>, %arg1: memref<1x3x1xf32, #tpu.memory_space<vmem>>, %arg2: memref<1x3x1xf32, #tpu.memory_space<vmem>>, %arg3: memref<2x3x256xf32, #tpu.memory_space<vmem>>) attributes {dimension_semantics = [], scalar_prefetch = 0 : i64, scratch_operands = 0 : i64, tpu.core_type = #tpu.core_type<tc>} {
    %c0 = arith.constant 0 : index
    %c0_0 = arith.constant 0 : index
    %c0_1 = arith.constant 0 : index
    %0 = vector.load %arg0[%c0, %c0_0, %c0_1] : memref<2x3x256xf32, #tpu.memory_space<vmem>>, vector<2x3x256xf32>
    %cst = arith.constant dense<0.000000e+00> : vector<2x3xf32>
    %1 = vector.multi_reduction <add>, %0, %cst [2] : vector<2x3x256xf32> to vector<2x3xf32>
    %2 = vector.shape_cast %1 : vector<2x3xf32> to vector<2x3x1xf32>
    %cst_2 = arith.constant dense<0.000000e+00> : vector<3x1xf32>
    %3 = vector.multi_reduction <add>, %2, %cst_2 [0] : vector<2x3x1xf32> to vector<3x1xf32>
    %4 = vector.shape_cast %3 : vector<3x1xf32> to vector<1x3x1xf32>
    %5 = arith.mulf %0, %0 : vector<2x3x256xf32>
    %cst_3 = arith.constant dense<0.000000e+00> : vector<2x3xf32>
    %6 = vector.multi_reduction <add>, %5, %cst_3 [2] : vector<2x3x256xf32> to vector<2x3xf32>
    %7 = vector.shape_cast %6 : vector<2x3xf32> to vector<2x3x1xf32>
    %cst_4 = arith.constant dense<0.000000e+00> : vector<3x1xf32>
    %8 = vector.multi_reduction <add>, %7, %cst_4 [0] : vector<2x3x1xf32> to vector<3x1xf32>
    %9 = vector.shape_cast %8 : vector<3x1xf32> to vector<1x3x1xf32>
    %cst_5 = arith.constant 5.120000e+02 : f32
    %10 = vector.broadcast %cst_5 : f32 to vector<1x3x1xf32>
    %11 = arith.divf %4, %10 : vector<1x3x1xf32>
    %cst_6 = arith.constant 5.120000e+02 : f32
    %12 = vector.broadcast %cst_6 : f32 to vector<1x3x1xf32>
    %13 = arith.divf %9, %12 : vector<1x3x1xf32>
    %14 = arith.mulf %11, %11 : vector<1x3x1xf32>
    %15 = arith.subf %13, %14 : vector<1x3x1xf32>
    %cst_7 = arith.constant 9.99999974E-6 : f32
    %16 = vector.broadcast %cst_7 : f32 to vector<1x3x1xf32>
    %17 = arith.addf %15, %16 : vector<1x3x1xf32>
    %18 = math.rsqrt %17 : vector<1x3x1xf32>
    %c0_8 = arith.constant 0 : index
    %c0_9 = arith.constant 0 : index
    %c0_10 = arith.constant 0 : index
    %19 = vector.load %arg1[%c0_8, %c0_9, %c0_10] : memref<1x3x1xf32, #tpu.memory_space<vmem>>, vector<1x3x1xf32>
    %20 = arith.mulf %19, %18 : vector<1x3x1xf32>
    %c0_11 = arith.constant 0 : index
    %c0_12 = arith.constant 0 : index
    %c0_13 = arith.constant 0 : index
    %21 = vector.load %arg2[%c0_11, %c0_12, %c0_13] : memref<1x3x1xf32, #tpu.memory_space<vmem>>, vector<1x3x1xf32>
    %22 = arith.mulf %11, %20 : vector<1x3x1xf32>
    %23 = arith.subf %21, %22 : vector<1x3x1xf32>
    %24 = vector.broadcast %20 : vector<1x3x1xf32> to vector<2x3x256xf32>
    %25 = arith.mulf %0, %24 : vector<2x3x256xf32>
    %26 = vector.broadcast %23 : vector<1x3x1xf32> to vector<2x3x256xf32>
    %27 = arith.addf %25, %26 : vector<2x3x256xf32>
    %cst_14 = arith.constant 0.000000e+00 : f32
    %28 = vector.broadcast %cst_14 : f32 to vector<2x3x256xf32>
    %29 = arith.maximumf %27, %28 : vector<2x3x256xf32>
    %c0_15 = arith.constant 0 : index
    %c0_16 = arith.constant 0 : index
    %c0_17 = arith.constant 0 : index
    %30 = vector.load %arg3[%c0_15, %c0_16, %c0_17] : memref<2x3x256xf32, #tpu.memory_space<vmem>>, vector<2x3x256xf32>
    tpu.vector_store %arg3[%c0_15, %c0_16, %c0_17], %29 {strides = array<i32>} : memref<2x3x256xf32, #tpu.memory_space<vmem>>, vector<2x3x256xf32>,
    return
  }
}

</mosaic_0001>

<llo_original>
// kernel: tpu_custom_call.1
$region0: #{tpu_custom_call.1}
  #allocation0 [shape = 'u32[]', space=smem, size = 0x4, offset = 0x4, fixed_abs, tag = 'smem constant byte address 0x4 - core index']
  #allocation1 [shape = 'u32[144,128]{1,0:T(1,128)}', space=vmem, size = 0x12000, scoped, tag = 'internal scratch']
  %s0 = inlined_call_operand.vmem [shape: f32[2,3,256], index: 0, kind: input, shape index: {}]
  %s1 = inlined_call_operand.vmem [shape: f32[1,3,1], index: 1, kind: input, shape index: {}]
  %s2 = inlined_call_operand.vmem [shape: f32[1,3,1], index: 2, kind: input, shape index: {}]
  %s3 = inlined_call_operand.vmem [shape: f32[2,3,256], index: 3, kind: output, shape index: {}]
  %s4 = sld [smem:[#allocation0]]
  $region22: #{tpu_custom_call.1} parent=0
    _
  %s6 = ssub.s32 1, %s4
  %s7 = scalar_select 0, %s6, %s4
  // Predicated region
  $region2: #{tpu_custom_call.1} parent=0 // pred_check
    _
  $region3: #{tpu_custom_call.1} parent=0 // pred_check_branch
    %9 = sbr.rel (0) target = $region5
  $region4: #{tpu_custom_call.1} parent=0 // pred_region
    _
  $region5: #{tpu_custom_call.1} parent=0 // pred_fallthru
    _
  // Predicated region
  $region6: #{tpu_custom_call.1} parent=0 // pred_check
    _
  $region7: #{tpu_custom_call.1} parent=0 // pred_check_branch
    %11 = sbr.rel (0) target = $region9
  $region8: #{tpu_custom_call.1} parent=0 // pred_region
    _
  $region9: #{tpu_custom_call.1} parent=0 // pred_fallthru
    _
  // Predicated region
  $region10: #{tpu_custom_call.1} parent=0 // pred_check
    _
  $region11: #{tpu_custom_call.1} parent=0 // pred_check_branch
    %13 = sbr.rel (0) target = $region13
  $region12: #{tpu_custom_call.1} parent=0 // pred_region
    _
  $region13: #{tpu_custom_call.1} parent=0 // pred_fallthru
    _
  %v14 = vld [vmem:[%s0] sm:$0x77]
  %v15 = vld [vmem:[%s0 + $0x8] sm:$0x77]
  %v18 = vcombine.high %v14, %v14
  %v19 = vcombine.high %v15, %v15
  %vm22 = vcmask 1042432
  %v23 = vsel %vm22, %v14, 0.0
  %v24 = vsel %vm22, %v18, 0.0
  %v25 = vadd.f32 %v23, %v24
  %26 = vadd.xlane.f32.xlu0 %v25
  %v27 = vpop.xlane.xlu0 %26
  %v28 = vsel %vm22, %v15, 0.0
  %v29 = vsel %vm22, %v19, 0.0
  %v30 = vadd.f32 %v28, %v29
  %31 = vadd.xlane.f32.xlu0 %v30
  %v32 = vpop.xlane.xlu0 %31
  %v33 = vsel %vm22, %v27, 0.0
  %v34 = vsel %vm22, %v32, 0.0
  %v35 = vadd.f32 %v33, %v34
  %v36 = vmul.f32 %v14, %v14
  %v37 = vmul.f32 %v15, %v15
  %v40 = vcombine.high %v36, %v36
  %v41 = vcombine.high %v37, %v37
  %v44 = vsel %vm22, %v36, 0.0
  %v45 = vsel %vm22, %v40, 0.0
  %v46 = vadd.f32 %v44, %v45
  %47 = vadd.xlane.f32.xlu0 %v46
  %v48 = vpop.xlane.xlu0 %47
  %v49 = vsel %vm22, %v37, 0.0
  %v50 = vsel %vm22, %v41, 0.0
  %v51 = vadd.f32 %v49, %v50
  %52 = vadd.xlane.f32.xlu0 %v51
  %v53 = vpop.xlane.xlu0 %52
  %v54 = vsel %vm22, %v48, 0.0
  %v55 = vsel %vm22, %v53, 0.0
  %v56 = vadd.f32 %v54, %v55
  %v57 = vrcp.pop 512.0
  %v58 = vmul.f32 %v35, %v57
  %v59 = vmul.f32 %v56, %v57
  %v60 = vmul.f32 %v58, %v58
  %v61 = vsub.f32 %v59, %v60
  %v62 = vadd.f32 %v61, 1e-05
  %v63 = vrsqrt.pop %v62
  %v64 = vld [vmem:[%s1] sm:$0x7]
  %v65 = vmul.f32 %v64, %v63
  %v66 = vld [vmem:[%s2] sm:$0x7]
  %v67 = vmul.f32 %v58, %v65
  %v68 = vsub.f32 %v66, %v67
  %70 = vset.pattern.permute.xlu0 0
  %71 = vperm.xlu0 %70, %v65
  %v72 = vpop.permute.xlu0 %71
  %v74 = vunpack.c.l.s4 839922192
  %v75 = vunpack.c.0.s8 %v74
  %v76 = vlaneseq
  %v77 = vshrl.u32 %v76, 7
  %v78 = vsub.s32 %v75, %v77
  %v79 = vrot.slane %v72, %v78
  %v81 = vmul.f32 %v14, %v79
  %v82 = vmul.f32 %v15, %v79
  %84 = vset.pattern.permute.xlu0 0
  %85 = vperm.xlu0 %84, %v68
  %v86 = vpop.permute.xlu0 %85
  %v88 = vunpack.c.l.s4 839922192
  %v89 = vunpack.c.0.s8 %v88
  %v90 = vlaneseq
  %v91 = vshrl.u32 %v90, 7
  %v92 = vsub.s32 %v89, %v91
  %v93 = vrot.slane %v86, %v92
  %v95 = vadd.f32 %v81, %v93
  %v96 = vadd.f32 %v82, %v93
  %v97 = vmax.f32 %v95, 0.0
  %v98 = vmax.f32 %v96, 0.0
  %99 = vst [vmem:[%s3] sm:$0x77] %v97
  %100 = vst [vmem:[%s3 + $0x8] sm:$0x77] %v98
  // Predicated region
  $region14: #{tpu_custom_call.1} parent=0 // pred_check
    _
  $region15: #{tpu_custom_call.1} parent=0 // pred_check_branch
    %102 = sbr.rel (0) target = $region17
  $region16: #{tpu_custom_call.1} parent=0 // pred_region
    _
  $region17: #{tpu_custom_call.1} parent=0 // pred_fallthru
    _
  // Predicated region
  $region18: #{tpu_custom_call.1} parent=0 // pred_check
    _
  $region19: #{tpu_custom_call.1} parent=0 // pred_check_branch
    %104 = sbr.rel (0) target = $region21
  $region20: #{tpu_custom_call.1} parent=0 // pred_region
    _
  $region21: #{tpu_custom_call.1} parent=0 // pred_fallthru
    _

</llo_original>
